<compile_context>
chip_gen: v7x
topology: tpu7x:2x2x1
jax: 0.10.0
libtpu: 0.0.40
codegen_flags: <defaults>
</compile_context>

<pallas_src>
import functools

import numpy as np
import jax
import jax.numpy as jnp
from jax import lax
from jax.experimental import pallas as pl
from jax.experimental.pallas import tpu as pltpu

# ----------------------------- configuration --------------------------------
SAMPLE_RATE = 16000
N_FFT = 512
WIN_LENGTH = int(0.025 * SAMPLE_RATE)   # 400
HOP_LENGTH = int(0.01 * SAMPLE_RATE)    # 160
ACOUSTIC_DIM = 16                       # n_mels (small synthetic; module default 80)
IN_PLANES = 8                           # in_planes_resnet (small synthetic; default 64)
EMBD_DIM = 32                           # bottleneck dim (small synthetic; default 256)
LDA_OUT = 128                           # fixed by the module
NUM_BLOCKS = (10, 20, 64, 3)            # ResNet293 block counts
WAV_LEN = 4096
BATCH = 2

_PARALLEL = pltpu.CompilerParams(dimension_semantics=("parallel",))


# ----------------------------- Pallas kernels -------------------------------
def _conv_bn_relu_kernel(cols_ref, w_ref, b_ref, o_ref):
    # cols_ref: (1, K, HW) bf16   w_ref: (Cout, K) bf16 (BN folded)
    # b_ref:    (Cout, 1) f32     o_ref: (1, Cout, HW) f32
    acc = jnp.dot(w_ref[...], cols_ref[0], preferred_element_type=jnp.float32)
    o_ref[0] = jnp.maximum(acc + b_ref[...], 0.0)


def _tail_kernel(cols_ref, w_ref, b_ref, res_ref, o_ref, *, inv_n):
    # fused: conv2 (BN folded) -> SimAM -> + identity residual -> ReLU
    x = jnp.dot(w_ref[...], cols_ref[0],
                preferred_element_type=jnp.float32) + b_ref[...]      # (C, HW)
    mu = jnp.mean(x, axis=1, keepdims=True)
    d = (x - mu) ** 2
    v = jnp.sum(d, axis=1, keepdims=True) * inv_n
    e_inv = d * (0.25 * pl.reciprocal(v + 1e-4, approx=True)) + 0.5
    y = x * jax.nn.sigmoid(e_inv)
    o_ref[0] = jnp.maximum(y + res_ref[0], 0.0)


def _tail_ds_kernel(cols_ref, w_ref, b_ref, xd_ref, wd_ref, bd_ref, o_ref, *, inv_n):
    # fused: conv2 (BN folded) -> SimAM -> + downsample(1x1 conv, BN folded) -> ReLU
    x = jnp.dot(w_ref[...], cols_ref[0],
                preferred_element_type=jnp.float32) + b_ref[...]      # (C, HW)
    mu = jnp.mean(x, axis=1, keepdims=True)
    d = (x - mu) ** 2
    v = jnp.sum(d, axis=1, keepdims=True) * inv_n
    e_inv = d * (0.25 * pl.reciprocal(v + 1e-4, approx=True)) + 0.5
    y = x * jax.nn.sigmoid(e_inv)
    res = jnp.dot(wd_ref[...], xd_ref[0],
                  preferred_element_type=jnp.float32) + bd_ref[...]   # (C, HW)
    o_ref[0] = jnp.maximum(y + res, 0.0)


def _asp_kernel(x_ref, w1_ref, b1_ref, w2_ref, b2_ref, mu_ref, sg_ref):
    # fused ASP: conv1d(k=1) -> ReLU -> [BN folded into] conv1d(k=1)
    #            -> softmax(T) -> attentive mean / std
    x = x_ref[0]                                                       # (Cf, T)
    h = jnp.maximum(jnp.dot(w1_ref[...], x,
                            preferred_element_type=jnp.float32) + b1_ref[...], 0.0)
    a = jnp.dot(w2_ref[...], h, preferred_element_type=jnp.float32) + b2_ref[...]
    a = a - jnp.max(a, axis=1, keepdims=True)
    e = jnp.exp(a)
    att = e * pl.reciprocal(jnp.sum(e, axis=1, keepdims=True), approx=True)
    mu = jnp.sum(x * att, axis=1, keepdims=True)                       # (Cf, 1)
    # sum(att)=1 so sum(att*(x-mu)^2) == sum(att*x^2) - mu^2 (stable form)
    var = jnp.sum((x - mu) ** 2 * att, axis=1, keepdims=True)
    mu_ref[0] = mu
    sg_ref[0] = jnp.sqrt(jnp.maximum(var, 1e-5))


def _head_kernel(x_ref, wb_ref, bb_ref, wl_ref, bl_ref, eo_ref, el_ref):
    # fused bottleneck Linear + LDA Linear (intermediate never leaves VMEM)
    e = jnp.dot(x_ref[...], wb_ref[...],
                preferred_element_type=jnp.float32) + bb_ref[...]
    eo_ref[...] = e
    el_ref[...] = jnp.dot(e, wl_ref[...],
                          preferred_element_type=jnp.float32) + bl_ref[...]


def _logmel_kernel(p_ref, fbt_ref, o_ref):
    # p_ref: (1, T, F) power spectrum   fbt_ref: (M, F)   o_ref: (1, M, T)
    mel = lax.dot_general(fbt_ref[...], p_ref[0],
                          (((1,), (1,)), ((), ())),
                          preferred_element_type=jnp.float32)          # (M, T)
    lm = jnp.log(mel + 1e-6)
    o_ref[0] = lm - jnp.mean(lm, axis=1, keepdims=True)                # mean over T


# ----------------------------- glue + pallas_call wrappers ------------------
def _im2col3x3(x4, stride):
    # (B, Cin, H, W) -> (B, 9*Cin, Ho*Wo) bf16, already decimated for stride>1.
    B, Cin, H, W = x4.shape
    Ho = (H - 1) // stride + 1
    Wo = (W - 1) // stride + 1
    xp = jnp.pad(x4, ((0, 0), (0, 0), (1, 1), (1, 1)))
    taps = [xp[:, :, kh:kh + stride * (Ho - 1) + 1:stride,
               kw:kw + stride * (Wo - 1) + 1:stride]
            for kh in range(3) for kw in range(3)]
    cols = jnp.stack(taps, axis=1)                       # (B, 9, Cin, Ho, Wo)
    cols = cols.reshape(B, 9 * Cin, Ho * Wo).astype(jnp.bfloat16)
    return cols, Ho, Wo


def _conv_bn_relu_impl(x4, wk, b, stride):
    B, Cin, H, W = x4.shape
    Cout = wk.shape[0]
    cols, Ho, Wo = _im2col3x3(x4, stride)
    K = 9 * Cin
    hw = Ho * Wo
    out = pl.pallas_call(
        _conv_bn_relu_kernel,
        out_shape=jax.ShapeDtypeStruct((B, Cout, hw), jnp.float32),
        grid=(B,),
        in_specs=[pl.BlockSpec((1, K, hw), lambda bb: (bb, 0, 0)),
                  pl.BlockSpec((Cout, K), lambda bb: (0, 0)),
                  pl.BlockSpec((Cout, 1), lambda bb: (0, 0))],
        out_specs=pl.BlockSpec((1, Cout, hw), lambda bb: (bb, 0, 0)),
        compiler_params=_PARALLEL,
    )(cols, wk, b)
    return out.reshape(B, Cout, Ho, Wo)


def _block_tail_impl(out1, res4, wk2, b2):
    # identity-residual tail: conv2+BN2 + SimAM + residual + ReLU
    B, C, H, W = out1.shape
    hw = H * W
    cols, _, _ = _im2col3x3(out1, 1)
    inv_n = 1.0 / float(max(hw - 1, 1))
    out = pl.pallas_call(
        functools.partial(_tail_kernel, inv_n=inv_n),
        out_shape=jax.ShapeDtypeStruct((B, C, hw), jnp.float32),
        grid=(B,),
        in_specs=[pl.BlockSpec((1, 9 * C, hw), lambda bb: (bb, 0, 0)),
                  pl.BlockSpec((C, 9 * C), lambda bb: (0, 0)),
                  pl.BlockSpec((C, 1), lambda bb: (0, 0)),
                  pl.BlockSpec((1, C, hw), lambda bb: (bb, 0, 0))],
        out_specs=pl.BlockSpec((1, C, hw), lambda bb: (bb, 0, 0)),
        compiler_params=_PARALLEL,
    )(cols, wk2, b2, res4.reshape(B, C, hw))
    return out.reshape(B, C, H, W)


def _block_tail_ds_impl(out1, x4, wk2, b2, wd, bd, stride):
    # downsample-residual tail: conv2+BN2 + SimAM + (1x1 conv + BN) + ReLU
    B, C, H, W = out1.shape
    hw = H * W
    Cin = x4.shape[1]
    cols, _, _ = _im2col3x3(out1, 1)
    xdec = x4[:, :, ::stride, ::stride].reshape(B, Cin, hw).astype(jnp.bfloat16)
    inv_n = 1.0 / float(max(hw - 1, 1))
    out = pl.pallas_call(
        functools.partial(_tail_ds_kernel, inv_n=inv_n),
        out_shape=jax.ShapeDtypeStruct((B, C, hw), jnp.float32),
        grid=(B,),
        in_specs=[pl.BlockSpec((1, 9 * C, hw), lambda bb: (bb, 0, 0)),
                  pl.BlockSpec((C, 9 * C), lambda bb: (0, 0)),
                  pl.BlockSpec((C, 1), lambda bb: (0, 0)),
                  pl.BlockSpec((1, Cin, hw), lambda bb: (bb, 0, 0)),
                  pl.BlockSpec((C, Cin), lambda bb: (0, 0)),
                  pl.BlockSpec((C, 1), lambda bb: (0, 0))],
        out_specs=pl.BlockSpec((1, C, hw), lambda bb: (bb, 0, 0)),
        compiler_params=_PARALLEL,
    )(cols, wk2, b2, xdec, wd, bd)
    return out.reshape(B, C, H, W)


def _asp_impl(x, w1, b1, w2, b2):
    # x: (B, Cf, T) fp32
    B, Cf, T = x.shape
    mu, sg = pl.pallas_call(
        _asp_kernel,
        out_shape=(jax.ShapeDtypeStruct((B, Cf, 1), jnp.float32),
                   jax.ShapeDtypeStruct((B, Cf, 1), jnp.float32)),
        grid=(B,),
        in_specs=[pl.BlockSpec((1, Cf, T), lambda bb: (bb, 0, 0)),
                  pl.BlockSpec(w1.shape, lambda bb: (0, 0)),
                  pl.BlockSpec(b1.shape, lambda bb: (0, 0)),
                  pl.BlockSpec(w2.shape, lambda bb: (0, 0)),
                  pl.BlockSpec(b2.shape, lambda bb: (0, 0))],
        out_specs=(pl.BlockSpec((1, Cf, 1), lambda bb: (bb, 0, 0)),
                   pl.BlockSpec((1, Cf, 1), lambda bb: (bb, 0, 0))),
        compiler_params=_PARALLEL,
    )(x, w1, b1, w2, b2)
    return jnp.concatenate([mu[:, :, 0], sg[:, :, 0]], axis=1)   # (B, 2*Cf)


def _head_impl(x, wb, bb, wl, bl):
    # fused bottleneck + LDA (weights pre-transposed at init)
    B = x.shape[0]
    return pl.pallas_call(
        _head_kernel,
        out_shape=(jax.ShapeDtypeStruct((B, wb.shape[1]), jnp.float32),
                   jax.ShapeDtypeStruct((B, wl.shape[1]), jnp.float32)),
    )(x, wb, bb, wl, bl)


def _logfbank_impl(wav, fbt, window):
    # wav: (B, L). torchaudio MelSpectrogram(center=True, reflect pad, power=2)
    B = wav.shape[0]
    wav_p = jnp.pad(wav, ((0, 0), (N_FFT // 2, N_FFT // 2)), mode="reflect")
    n_frames = 1 + (wav_p.shape[1] - N_FFT) // HOP_LENGTH
    idx = (jnp.arange(n_frames)[:, None] * HOP_LENGTH
           + jnp.arange(N_FFT)[None, :])
    frames = wav_p[:, idx] * window[None, None, :]
    # TODO(synk): rFFT has no Pallas TPU primitive; computed with XLA FFT here.
    spec = jnp.fft.rfft(frames, n=N_FFT, axis=-1)
    power = (jnp.real(spec) ** 2 + jnp.imag(spec) ** 2).astype(jnp.float32)
    T, F = power.shape[1], power.shape[2]
    M = fbt.shape[0]
    return pl.pallas_call(
        _logmel_kernel,
        out_shape=jax.ShapeDtypeStruct((B, M, T), jnp.float32),
        grid=(B,),
        in_specs=[pl.BlockSpec((1, T, F), lambda bb: (bb, 0, 0)),
                  pl.BlockSpec((M, F), lambda bb: (0, 0))],
        out_specs=pl.BlockSpec((1, M, T), lambda bb: (bb, 0, 0)),
        compiler_params=_PARALLEL,
    )(power, fbt)                                           # (B, n_mels, T)


conv_bn_relu = jax.jit(_conv_bn_relu_impl, static_argnums=(3,))
block_tail = jax.jit(_block_tail_impl)
block_tail_ds = jax.jit(_block_tail_ds_impl, static_argnums=(6,))
asp_pool = jax.jit(_asp_impl)
head = jax.jit(_head_impl)
log_fbank = jax.jit(_logfbank_impl)


# ----------------------------- model assembly -------------------------------
def mel_filterbank(n_freqs, n_mels, sample_rate, f_min=0.0, f_max=None):
    # torchaudio.functional.melscale_fbanks(norm=None, mel_scale="htk")
    if f_max is None:
        f_max = sample_rate / 2.0
    hz2mel = lambda f: 2595.0 * np.log10(1.0 + f / 700.0)
    mel2hz = lambda m: 700.0 * (10.0 ** (m / 2595.0) - 1.0)
    all_freqs = np.linspace(0.0, sample_rate // 2, n_freqs)
    m_pts = np.linspace(hz2mel(f_min), hz2mel(f_max), n_mels + 2)
    f_pts = mel2hz(m_pts)
    f_diff = f_pts[1:] - f_pts[:-1]
    slopes = f_pts[None, :] - all_freqs[:, None]
    down = -slopes[:, :-2] / f_diff[:-1]
    up = slopes[:, 2:] / f_diff[1:]
    return np.maximum(0.0, np.minimum(down, up)).astype(np.float32)   # (F, M)


def make_window():
    n = np.arange(WIN_LENGTH)
    hann = 0.5 - 0.5 * np.cos(2.0 * np.pi * n / WIN_LENGTH)   # periodic Hann
    window = np.zeros(N_FFT, dtype=np.float32)
    left = (N_FFT - WIN_LENGTH) // 2
    window[left:left + WIN_LENGTH] = hann                     # centered, zero-padded
    return window


def init_params(seed=0):
    rng = np.random.default_rng(seed)

    def conv_w(cout, cin, k):
        fan_in = cin * k * k
        return (rng.standard_normal((cout, cin, k, k)).astype(np.float32)
                * (0.5 / np.sqrt(fan_in)))

    def bn_raw(c):
        gamma = 1.0 + 0.1 * rng.standard_normal(c).astype(np.float32)
        beta = 0.1 * rng.standard_normal(c).astype(np.float32)
        mean = 0.1 * rng.standard_normal(c).astype(np.float32)
        var = 1.0 + 0.1 * rng.random(c).astype(np.float32)
        scale = gamma / np.sqrt(var + 1e-5)
        shift = beta - mean * scale
        return scale.astype(np.float32), shift.astype(np.float32)

    def fold3x3(w, scale, shift):
        # conv(w) then BN  ==  conv(w * scale) + shift ; matmul layout (Cout, 9*Cin)
        wf = w * scale[:, None, None, None]
        wk = np.transpose(wf, (0, 2, 3, 1)).reshape(w.shape[0], -1)
        return (jnp.asarray(wk, dtype=jnp.bfloat16),
                jnp.asarray(shift.reshape(-1, 1)))

    def fold1x1(w, scale, shift):
        wf = w[:, :, 0, 0] * scale[:, None]
        return (jnp.asarray(wf, dtype=jnp.bfloat16),
                jnp.asarray(shift.reshape(-1, 1)))

    def lin(out_f, in_f):
        w = rng.standard_normal((out_f, in_f)).astype(np.float32) * (0.5 / np.sqrt(in_f))
        b = 0.05 * rng.standard_normal(out_f).astype(np.float32)
        return w, b

    params = {}
    params["stem_w"], params["stem_b"] = fold3x3(conv_w(IN_PLANES, 1, 3),
                                                 *bn_raw(IN_PLANES))

    def make_block(cin, planes, stride):
        bp = {"stride": int(stride)}
        bp["w1"], bp["b1"] = fold3x3(conv_w(planes, cin, 3), *bn_raw(planes))
        bp["w2"], bp["b2"] = fold3x3(conv_w(planes, planes, 3), *bn_raw(planes))
        if stride != 1 or cin != planes:
            bp["wd"], bp["bd"] = fold1x1(conv_w(planes, cin, 1), *bn_raw(planes))
        return bp

    layers = []
    in_planes = IN_PLANES
    layer_cfg = [(IN_PLANES, NUM_BLOCKS[0], 1),
                 (IN_PLANES * 2, NUM_BLOCKS[1], 2),
                 (IN_PLANES * 4, NUM_BLOCKS[2], 2),
                 (IN_PLANES * 8, NUM_BLOCKS[3], 2)]
    for planes, nblocks, stride in layer_cfg:
        strides = [stride] + [1] * (nblocks - 1)
        blocks = []
        for s in strides:
            blocks.append(make_block(in_planes, planes, s))
            in_planes = planes
        layers.append(blocks)
    params["layers"] = layers

    # ASP: expected_attention_input_channels = (in_planes*8) * (acoustic_dim/8)
    cf = IN_PLANES * 8 * (ACOUSTIC_DIM // 8)
    aw1, ab1 = lin(128, cf)
    a_scale, a_shift = bn_raw(128)
    aw2, ab2 = lin(cf, 128)
    # fold BN1d (after ReLU) into the second 1x1 conv: W2*(h*s+t)+b2
    w2f = aw2 * a_scale[None, :]
    b2f = aw2 @ a_shift + ab2
    params["asp"] = dict(w1=jnp.asarray(aw1), b1=jnp.asarray(ab1.reshape(-1, 1)),
                         w2=jnp.asarray(w2f), b2=jnp.asarray(b2f.reshape(-1, 1)))

    bw, bb = lin(EMBD_DIM, 2 * cf)
    lw, lb = lin(LDA_OUT, EMBD_DIM)
    params["head"] = dict(wb=jnp.asarray(bw.T), bb=jnp.asarray(bb.reshape(1, -1)),
                          wl=jnp.asarray(lw.T), bl=jnp.asarray(lb.reshape(1, -1)))
    return params


def block_forward(x, bp):
    out1 = conv_bn_relu(x, bp["w1"], bp["b1"], bp["stride"])
    if "wd" in bp:
        return block_tail_ds(out1, x, bp["w2"], bp["b2"],
                             bp["wd"], bp["bd"], bp["stride"])
    return block_tail(out1, x, bp["w2"], bp["b2"])


def resnet_forward(x, params):
    x = conv_bn_relu(x, params["stem_w"], params["stem_b"], 1)
    for blocks in params["layers"]:
        for bp in blocks:
            x = block_forward(x, bp)
    return x


def prepare_input(wav, sample_rate):
    # mirrors SpeakerEmbedding.prepare_input
    if wav.ndim == 1:
        wav = wav[None, None, :]
    elif wav.ndim == 2:
        if wav.shape[0] > 1 and wav.shape[1] > 1024:
            wav = jnp.mean(wav, axis=0, keepdims=True)[None]
        else:
            wav = wav[:, None, :]
    elif wav.ndim == 3:
        if wav.shape[1] > 1:
            wav = jnp.mean(wav, axis=1, keepdims=True)
    if wav.ndim == 3 and wav.shape[1] == 1:
        wav = wav[:, 0, :]
    if sample_rate != 16000:
        # TODO(synk): torchaudio.transforms.Resample not implemented in Pallas.
        raise NotImplementedError("resampling not implemented; pass 16 kHz audio")
    return wav


def speaker_embedding_lda_forward(wav, sample_rate, params, fbt, window):
    prepared = prepare_input(wav, sample_rate)                  # (B, L)
    feats = log_fbank(prepared, fbt, window)                    # (B, n_mels, T)
    x = feats[:, None, :, :]                                    # (B, 1, n_mels, T)  NCHW
    x = resnet_forward(x, params)                               # (B, 8P, n_mels/8, ceil(T/8))
    B, C, Hh, T = x.shape
    asp_in = x.reshape(B, C * Hh, T)                            # == torch reshape(B,-1,T)
    a = params["asp"]
    pooled = asp_pool(asp_in, a["w1"], a["b1"], a["w2"], a["b2"])   # (B, 2*Cf)
    h = params["head"]
    emb_orig, emb_lda = head(pooled, h["wb"], h["bb"], h["wl"], h["bl"])
    return emb_orig, emb_lda


# ----------------------------- main ------------------------------------------
if __name__ == "__main__":
    key = jax.random.PRNGKey(0)
    wav = 0.1 * jax.random.normal(key, (BATCH, 1, WAV_LEN), dtype=jnp.float32)

    params = init_params(seed=0)
    fbt = jnp.asarray(mel_filterbank(N_FFT // 2 + 1, ACOUSTIC_DIM, SAMPLE_RATE).T)  # (M, F)
    window = jnp.asarray(make_window())

    emb_orig, emb_lda = speaker_embedding_lda_forward(wav, SAMPLE_RATE, params, fbt, window)
    (emb_orig, emb_lda) = jax.block_until_ready((emb_orig, emb_lda))

    assert emb_orig.shape == (BATCH, EMBD_DIM), emb_orig.shape
    assert emb_lda.shape == (BATCH, LDA_OUT), emb_lda.shape
    assert emb_orig.dtype == jnp.float32 and emb_lda.dtype == jnp.float32
    assert bool(jnp.all(jnp.isfinite(emb_orig))) and bool(jnp.all(jnp.isfinite(emb_lda)))
    print("KERNEL_OK")
</pallas_src>

<mosaic_0001>
module attributes {stable_mosaic.version = 11 : i64} {
  func.func @_logmel_kernel(%arg0: i32, %arg1: memref<1x26x257xf32, #tpu.memory_space<vmem>>, %arg2: memref<16x257xf32, #tpu.memory_space<vmem>>, %arg3: memref<1x16x26xf32, #tpu.memory_space<vmem>>) attributes {dimension_semantics = [#tpu.dimension_semantics<parallel>], iteration_bounds = array<i64: 2>, scalar_prefetch = 0 : i64, scratch_operands = 0 : i64, tpu.core_type = #tpu.core_type<tc>, window_params = [{transform_indices = @transform_0, window_bounds = array<i64: 1, 26, 257>}, {pipeline_mode = #tpu.pipeline_mode<synchronous>, transform_indices = @transform_1, window_bounds = array<i64: 16, 257>}, {transform_indices = @transform_2, window_bounds = array<i64: 1, 16, 26>}]} {
    %c0 = arith.constant 0 : index
    %c0_0 = arith.constant 0 : index
    %0 = vector.load %arg2[%c0, %c0_0] : memref<16x257xf32, #tpu.memory_space<vmem>>, vector<16x257xf32>
    %c0_1 = arith.constant 0 : index
    %c0_2 = arith.constant 0 : index
    %c0_3 = arith.constant 0 : index
    %1 = vector.load %arg1[%c0_1, %c0_2, %c0_3] : memref<1x26x257xf32, #tpu.memory_space<vmem>>, vector<1x26x257xf32>
    %2 = vector.shape_cast %1 : vector<1x26x257xf32> to vector<26x257xf32>
    %cst = arith.constant dense<0.000000e+00> : vector<16x26xf32>
    %3 = tpu.matmul %0, %2, %cst {dimension_numbers = #tpu.dot_dimension_numbers<[1], [1], [0], [0], [0, 0, 1, 0], [], []>} : vector<16x257xf32>, vector<26x257xf32>, vector<16x26xf32> -> vector<16x26xf32>
    %cst_4 = arith.constant 9.99999997E-7 : f32
    %4 = vector.broadcast %cst_4 : f32 to vector<16x26xf32>
    %5 = arith.addf %3, %4 : vector<16x26xf32>
    %6 = math.log %5 : vector<16x26xf32>
    %cst_5 = arith.constant dense<0.000000e+00> : vector<16xf32>
    %7 = vector.multi_reduction <add>, %6, %cst_5 [1] : vector<16x26xf32> to vector<16xf32>
    %8 = vector.shape_cast %7 : vector<16xf32> to vector<16x1xf32>
    %cst_6 = arith.constant 2.600000e+01 : f32
    %9 = vector.broadcast %cst_6 : f32 to vector<16x1xf32>
    %10 = arith.divf %8, %9 : vector<16x1xf32>
    %11 = vector.broadcast %10 : vector<16x1xf32> to vector<16x26xf32>
    %12 = arith.subf %6, %11 : vector<16x26xf32>
    %c0_7 = arith.constant 0 : index
    %c0_8 = arith.constant 0 : index
    %c0_9 = arith.constant 0 : index
    %13 = vector.load %arg3[%c0_7, %c0_8, %c0_9] : memref<1x16x26xf32, #tpu.memory_space<vmem>>, vector<1x16x26xf32>
    %14 = vector.shape_cast %13 : vector<1x16x26xf32> to vector<16x26xf32>
    %15 = vector.shape_cast %12 : vector<16x26xf32> to vector<1x16x26xf32>
    tpu.vector_store %arg3[%c0_7, %c0_8, %c0_9], %15 {strides = array<i32>} : memref<1x16x26xf32, #tpu.memory_space<vmem>>, vector<1x16x26xf32>,
    return
  }
  func.func @transform_0(%arg0: i32) -> (i32, i32, i32) {
    %c0_i32 = arith.constant 0 : i32
    %c0_i32_0 = arith.constant 0 : i32
    %c0_i32_1 = arith.constant 0 : i32
    return %arg0, %c0_i32, %c0_i32_0 : i32, i32, i32
  }
  func.func @transform_1(%arg0: i32) -> (i32, i32) {
    %c0_i32 = arith.constant 0 : i32
    %c0_i32_0 = arith.constant 0 : i32
    %c0_i32_1 = arith.constant 0 : i32
    return %c0_i32, %c0_i32_0 : i32, i32
  }
  func.func @transform_2(%arg0: i32) -> (i32, i32, i32) {
    %c0_i32 = arith.constant 0 : i32
    %c0_i32_0 = arith.constant 0 : i32
    %c0_i32_1 = arith.constant 0 : i32
    return %arg0, %c0_i32, %c0_i32_0 : i32, i32, i32
  }
}

</mosaic_0001>

<llo_original>
// kernel: _logfbank_impl.1
$region0: #{_logfbank_impl.1}
  #allocation0 [shape = 'u32[]', space=smem, size = 0x4, offset = 0x4, fixed_abs, tag = 'smem constant byte address 0x4 - core index']
  #allocation1 [shape = 'u32[144,128]{1,0:T(1,128)}', space=vmem, size = 0x12000, scoped, tag = 'internal scratch']
  %s0 = inlined_call_operand.vmem [shape: f32[2,26,257], index: 0, kind: input, shape index: {}]
  %s1 = inlined_call_operand.vmem [shape: f32[16,257], index: 1, kind: input, shape index: {}]
  %s2 = inlined_call_operand.hbm [shape: f32[2,16,26], index: 2, kind: output, shape index: {}]
  %s3 = sld [smem:[#allocation0]]
  $region41: #{_logfbank_impl.1} parent=0
    _
  %s5 = ssub.s32 1, %s3
  %s6 = scalar_select 0, %s5, %s3
  $region1: #{_logfbank_impl.1} parent=0
    #allocation2 [shape = 'u8[16384]{0}', space=vmem, size = 0x4000, scoped, tag = 'output window, operand 0']
    #allocation3 [shape = 's32[2]{0}', space=sflag, size = 0x8, scoped, tag = 'scoped memory for _logfbank_impl.1']
    %7 = vsyncpa [#allocation3], 0
    %s8 = scalar_lea.sflag [#allocation3], 1
    %9 = vsyncpa %s8, 0
    loop: start=0, step=1, limit=4
    $region2: #{_logfbank_impl.1} parent=1 // loop_pre_header
      _
    $region3: #{_logfbank_impl.1} parent=1 // loop_header
      %s11 = sphi 0, %s15
      %p12 = scmp.ge.s32.totalorder %s11, 4
      %s21 = sphi 0, %s23
      %s24 = sphi 0, %s21
      %s25 = sphi 0, %s24
      %s41 = sphi 0, %s25
      %s45 = sphi 0, %s45
      %s47 = sphi 0, %s45
      %s48 = sphi 0, %s47
      %s62 = sphi 0, %s48
      %s68 = sphi 0, %s70
      %s71 = sphi 0, %s68
      %s72 = sphi 0, %s71
      %s88 = sphi 0, %s72
    $region4: #{_logfbank_impl.1} parent=1 // loop_header_branch
      %14 = sbr.rel (%p12) target = $region8
    $region5: #{_logfbank_impl.1} parent=1 // loop_body
      %s16 = ssub.s32 %s11, 1
      %s17 = ssub.s32 %s11, 2
      %s18 = sadd.s32 %s11, 1
      %s19 = ssub.s32 %s11, %s18
      %p20 = scmp.eq.s32.totalorder %s19, 0
      %s22 = sadd.s32 %s21, 1
      %s23 = scalar_select %p20, %s21, %s22
      %p26 = pneg %p20
      %p27 = scmp.eq.s32.totalorder %s11, 1
      %p28 = por %p26, %p27
      %p29 = scmp.ne.s32.totalorder %s21, %s24
      %p30 = scmp.eq.s32.totalorder %s11, 0
      %p31 = por %p29, %p30
      %p32 = scmp.ne.s32.totalorder %s21, %s24
      %p33 = scmp.eq.s32.totalorder %s16, 1
      %p34 = por %p32, %p33
      %p35 = scmp.ne.s32.totalorder %s24, %s25
      %p36 = scmp.eq.s32.totalorder %s16, 0
      %p37 = por %p35, %p36
      %p38 = scmp.ne.s32.totalorder %s24, %s25
      %p39 = scmp.eq.s32.totalorder %s17, 1
      %p40 = por %p38, %p39
      %p42 = scmp.ne.s32.totalorder %s25, %s41
      %p43 = scmp.eq.s32.totalorder %s17, 0
      %p44 = por %p42, %p43
      %s46 = sadd.s32 %s45, 1
      %p49 = scmp.eq.s32.totalorder %s11, 1
      %p50 = scmp.ne.s32.totalorder %s45, %s47
      %p51 = scmp.eq.s32.totalorder %s11, 0
      %p52 = por %p50, %p51
      %p53 = scmp.ne.s32.totalorder %s45, %s47
      %p54 = scmp.eq.s32.totalorder %s16, 1
      %p55 = por %p53, %p54
      %p56 = scmp.ne.s32.totalorder %s47, %s48
      %p57 = scmp.eq.s32.totalorder %s16, 0
      %p58 = por %p56, %p57
      %p59 = scmp.ne.s32.totalorder %s47, %s48
      %p60 = scmp.eq.s32.totalorder %s17, 1
      %p61 = por %p59, %p60
      %p63 = scmp.ne.s32.totalorder %s48, %s62
      %p64 = scmp.eq.s32.totalorder %s17, 0
      %p65 = por %p63, %p64
      %s66 = ssub.s32 %s11, %s18
      %p67 = scmp.eq.s32.totalorder %s66, 0
      %s69 = sadd.s32 %s68, 1
      %s70 = scalar_select %p67, %s68, %s69
      %p73 = pneg %p67
      %p74 = scmp.eq.s32.totalorder %s11, 1
      %p75 = por %p73, %p74
      %p76 = scmp.ne.s32.totalorder %s68, %s71
      %p77 = scmp.eq.s32.totalorder %s11, 0
      %p78 = por %p76, %p77
      %p79 = scmp.ne.s32.totalorder %s68, %s71
      %p80 = scmp.eq.s32.totalorder %s16, 1
      %p81 = por %p79, %p80
      %p82 = scmp.ne.s32.totalorder %s71, %s72
      %p83 = scmp.eq.s32.totalorder %s16, 0
      %p84 = por %p82, %p83
      %p85 = scmp.ne.s32.totalorder %s71, %s72
      %p86 = scmp.eq.s32.totalorder %s17, 1
      %p87 = por %p85, %p86
      %p89 = scmp.ne.s32.totalorder %s72, %s88
      %p90 = scmp.eq.s32.totalorder %s17, 0
      %p91 = por %p89, %p90
      %p92 = scmp.le.s32.totalorder 1, %s11
      %p93 = scmp.lt.s32.totalorder %s11, 3
      %p94 = pnand %p92, %p93
      %p95 = pneg %p94
      // Predicated region
      $region9: #{_logfbank_impl.1} parent=5 // pred_check
        _
      $region10: #{_logfbank_impl.1} parent=5 // pred_check_branch
        %97 = sbr.rel (%p94) target = $region12
      $region11: #{_logfbank_impl.1} parent=5 // pred_region
        %s98 = ssub.s32 %s11, 1
        // Predicated region
        $region13: #{_logfbank_impl.1} parent=11 // pred_check
          %p99 = pneg %p58
        $region14: #{_logfbank_impl.1} parent=11 // pred_check_branch
          %101 = sbr.rel (%p99) target = $region16
        $region15: #{_logfbank_impl.1} parent=11 // pred_region
          _
        $region16: #{_logfbank_impl.1} parent=11 // pred_fallthru
          _
      $region12: #{_logfbank_impl.1} parent=5 // pred_fallthru
        _
      %p102 = scmp.lt.s32.totalorder %s11, 2
      // Predicated region
      $region17: #{_logfbank_impl.1} parent=5 // pred_check
        %p103 = pneg %p102
      $region18: #{_logfbank_impl.1} parent=5 // pred_check_branch
        %105 = sbr.rel (%p103) target = $region20
      $region19: #{_logfbank_impl.1} parent=5 // pred_region
        // Predicated region
        $region21: #{_logfbank_impl.1} parent=19 // pred_check
          %p106 = pneg %p31
        $region22: #{_logfbank_impl.1} parent=19 // pred_check_branch
          %108 = sbr.rel (%p106) target = $region24
        $region23: #{_logfbank_impl.1} parent=19 // pred_region
          %p109 = scmp.lt.s32.totalorder %s11, 1
          %s110 = scalar_select %p109, %s11, 1
          %s111 = smul.addr %s110, 12
          %s112 = smul.addr %s111, 8
          %s113 = scalar_lea.vmem %s0, %s112
        $region24: #{_logfbank_impl.1} parent=19 // pred_fallthru
          _
      $region20: #{_logfbank_impl.1} parent=5 // pred_fallthru
        _
      %p114 = scmp.le.s32.totalorder 1, %s11
      %p115 = scmp.lt.s32.totalorder %s11, 3
      %p116 = pnand %p114, %p115
      %p117 = pneg %p116
      // Predicated region
      $region25: #{_logfbank_impl.1} parent=5 // pred_check
        _
      $region26: #{_logfbank_impl.1} parent=5 // pred_check_branch
        %119 = sbr.rel (%p116) target = $region28
      $region27: #{_logfbank_impl.1} parent=5 // pred_region
        %s120 = ssub.s32 %s11, 1
        %p121 = scmp.lt.s32.totalorder %s16, 1
        %s122 = scalar_select %p121, %s16, 1
        %s123 = smul.addr %s122, 12
        %s124 = smul.addr %s123, 8
        %s125 = scalar_lea.vmem %s0, %s124
        %p126 = pneg %p37
        %p127 = pneg %p34
        %p128 = pneg %p58
        %p129 = pneg %p55
        %p130 = pneg %p84
        %p131 = pneg %p81
        %s132 = sand.u32 %s71, 1
        %s133 = scalar_lea.sflag [#allocation3], %s132
        %s134 = sand.u32 %s71, 1
        %s135 = smul.addr %s134, 16
        %s136 = scalar_lea.vmem [#allocation2], %s135
        %p137 = scmp.lt.s32.totalorder %s16, 1
        %s138 = scalar_select %p137, %s16, 1
        %s139 = smul.addr %s138, 12
        %s140 = smul.addr %s139, 8
        %s141 = scalar_lea.vmem %s0, %s140
        %v142 = vld [vmem:[%s1] sm:$0xff]
        %v143 = vld [vmem:[%s1 + $0x8] sm:$0xff]
        %v144 = vld [vmem:[%s1 + $0x10] sm:$0xff]
        %v145 = vld [vmem:[%s1 + $0x18] sm:$0xff]
        %v146 = vld [vmem:[%s1 + $0x20] sm:$0xff]
        %v147 = vld [vmem:[%s1 + $0x28] sm:$0xff]
        %v148 = vld [vmem:[%s141] sm:$0xff]
        %v149 = vld [vmem:[%s141 + $0x8] sm:$0xff]
        %v150 = vld [vmem:[%s141 + $0x10] sm:$0xff]
        %v151 = vld [vmem:[%s141 + $0x18] sm:$0xff]
        %v152 = vld [vmem:[%s141 + $0x20] sm:$0xff]
        %v153 = vld [vmem:[%s141 + $0x28] sm:$0xff]
        %v154 = vld [vmem:[%s141 + $0x30] sm:$0xff]
        %v155 = vld [vmem:[%s141 + $0x38] sm:$0xff]
        %v156 = vld [vmem:[%s141 + $0x40] sm:$0xff]
        %v157 = vld [vmem:[%s141 + $0x48] sm:$0x3]
        %v158 = vld [vmem:[%s141 + $0x50] sm:$0x3]
        %v159 = vld [vmem:[%s141 + $0x58] sm:$0x3]
        %vm160 = vcmask 7168
        %v162 = vsel %vm160, %v144, 0
        %v165 = vsel %vm160, %v147, 0
        %v168 = vsel %vm160, %v150, 0
        %v171 = vsel %vm160, %v153, 0
        %v174 = vsel %vm160, %v156, 0
        %v177 = vsel %vm160, %v159, 0
        %179 = vmatprep.subr.mxu0 %v149
        %180 = vmatpush1.xpose.msra.mxu0 %v148
        %181 = vmatprep.subr.mxu0 %v152
        %182 = vmatpush1.xpose.msra.mxu0 %v151
        %183 = vmatprep.subr.mxu0 %v155
        %184 = vmatpush1.xpose.msra.mxu0 %v154
        %185 = vmatprep.subr.mxu0 %v158
        %186 = vmatpush1.xpose.msra.mxu0 %v157
        %187 = vmatprep.subr.mxu0 0.0
        %188 = vmatpush1.xpose.msra.mxu0 0.0
        %189 = vmatprep.subr.mxu0 0.0
        %190 = vmatpush1.xpose.msra.mxu0 0.0
        %191 = vmatprep.subr.mxu0 0.0
        %192 = vmatpush1.xpose.msra.mxu0 0.0
        %193 = vmatprep.subr.mxu0 0.0
        %194 = vmatpush1.xpose.msra.mxu0 0.0
        %195 = vmatprep.subr.mxu0 0.0
        %196 = vmatpush1.xpose.msra.mxu0 0.0
        %197 = vmatprep.subr.mxu0 0.0
        %198 = vmatpush1.xpose.msra.mxu0 0.0
        %199 = vmatprep.subr.mxu0 0.0
        %200 = vmatpush1.xpose.msra.mxu0 0.0
        %201 = vmatprep.subr.mxu0 0.0
        %202 = vmatpush1.xpose.msra.mxu0 0.0
        %203 = vmatprep.subr.mxu0 0.0
        %204 = vmatpush1.xpose.msra.mxu0 0.0
        %205 = vmatprep.subr.mxu0 0.0
        %206 = vmatpush1.xpose.msra.mxu0 0.0
        %207 = vmatprep.subr.mxu0 0.0
        %208 = vmatpush1.xpose.msra.mxu0 0.0
        %209 = vmatprep.subr.mxu0 0.0
        %210 = vmatpush1.xpose.msra.mxu0 0.0
        %211 = vmatprep.subr.mxu0 0.0
        %212 = vmatpush1.xpose.msra.mxu0 0.0
        %213 = vmatprep.subr.mxu0 0.0
        %214 = vmatpush1.xpose.msra.mxu0 0.0
        %215 = vmatprep.subr.mxu0 0.0
        %216 = vmatpush1.xpose.msra.mxu0 0.0
        %217 = vmatprep.subr.mxu0 0.0
        %218 = vmatpush1.xpose.msra.mxu0 0.0
        %219 = vmatprep.subr.mxu0 0.0
        %220 = vmatpush1.xpose.msra.mxu0 0.0
        %221 = vmatprep.subr.mxu0 0.0
        %222 = vmatpush1.xpose.msra.mxu0 0.0
        %223 = vmatprep.subr.mxu0 0.0
        %224 = vmatpush1.xpose.msra.mxu0 0.0
        %225 = vmatprep.subr.mxu0 0.0
        %226 = vmatpush1.xpose.msra.mxu0 0.0
        %227 = vmatprep.subr.mxu0 0.0
        %228 = vmatpush1.xpose.msra.mxu0 0.0
        %229 = vmatprep.subr.mxu0 0.0
        %230 = vmatpush1.xpose.msra.mxu0 0.0
        %231 = vmatprep.subr.mxu0 0.0
        %232 = vmatpush1.xpose.msra.mxu0 0.0
        %233 = vmatprep.subr.mxu0 0.0
        %234 = vmatpush1.xpose.msra.mxu0 0.0
        %235 = vmatprep.subr.mxu0 0.0
        %236 = vmatpush1.xpose.msra.mxu0 0.0
        %237 = vmatprep.subr.mxu0 0.0
        %238 = vmatpush1.xpose.msra.mxu0 0.0
        %239 = vmatprep.subr.mxu0 0.0
        %240 = vmatpush1.xpose.msra.mxu0 0.0
        %241 = vmatprep.subr.mxu0 0.0
        %242 = vmatpush1.xpose.msra.mxu0 0.0
        %243 = vmatprep.mubr.f32.mxu0 %v143
        %244 = vmatmul.mubr.f32.gmra.mrb[0].mxu0 %v142
        %v245 = vpop.f32.mrb[0].mxu0
        %v246 = vadd.f32 1e-06, %v245
        %v247 = vpop.f32.mrb[0].mxu0
        %248 = vmatprep.mubr.f32.mxu0 %v146
        %249 = vmatmul.mubr.f32.gmra.mrb[0].mxu0 %v145
        %v250 = vpop.f32.mrb[0].mxu0
        %v251 = vadd.f32 1e-06, %v250
        %v252 = vpop.f32.mrb[0].mxu0
        %253 = vdwg.mxu0
        %254 = vmatprep.subr.mxu0 0.0
        %255 = vmatpush1.xpose.msra.mxu0 %v168
        %256 = vmatprep.subr.mxu0 0.0
        %257 = vmatpush1.xpose.msra.mxu0 %v171
        %258 = vmatprep.subr.mxu0 0.0
        %259 = vmatpush1.xpose.msra.mxu0 %v174
        %260 = vmatprep.subr.mxu0 0.0
        %261 = vmatpush1.xpose.msra.mxu0 %v177
        %262 = vmatprep.subr.mxu0 0.0
        %263 = vmatpush1.xpose.msra.mxu0 0.0
        %264 = vmatprep.subr.mxu0 0.0
        %265 = vmatpush1.xpose.msra.mxu0 0.0
        %266 = vmatprep.subr.mxu0 0.0
        %267 = vmatpush1.xpose.msra.mxu0 0.0
        %268 = vmatprep.subr.mxu0 0.0
        %269 = vmatpush1.xpose.msra.mxu0 0.0
        %270 = vmatprep.subr.mxu0 0.0
        %271 = vmatpush1.xpose.msra.mxu0 0.0
        %272 = vmatprep.subr.mxu0 0.0
        %273 = vmatpush1.xpose.msra.mxu0 0.0
        %274 = vmatprep.subr.mxu0 0.0
        %275 = vmatpush1.xpose.msra.mxu0 0.0
        %276 = vmatprep.subr.mxu0 0.0
        %277 = vmatpush1.xpose.msra.mxu0 0.0
        %278 = vmatprep.subr.mxu0 0.0
        %279 = vmatpush1.xpose.msra.mxu0 0.0
        %280 = vmatprep.subr.mxu0 0.0
        %281 = vmatpush1.xpose.msra.mxu0 0.0
        %282 = vmatprep.subr.mxu0 0.0
        %283 = vmatpush1.xpose.msra.mxu0 0.0
        %284 = vmatprep.subr.mxu0 0.0
        %285 = vmatpush1.xpose.msra.mxu0 0.0
        %286 = vmatprep.subr.mxu0 0.0
        %287 = vmatpush1.xpose.msra.mxu0 0.0
        %288 = vmatprep.subr.mxu0 0.0
        %289 = vmatpush1.xpose.msra.mxu0 0.0
        %290 = vmatprep.subr.mxu0 0.0
        %291 = vmatpush1.xpose.msra.mxu0 0.0
        %292 = vmatprep.subr.mxu0 0.0
        %293 = vmatpush1.xpose.msra.mxu0 0.0
        %294 = vmatprep.subr.mxu0 0.0
        %295 = vmatpush1.xpose.msra.mxu0 0.0
        %296 = vmatprep.subr.mxu0 0.0
        %297 = vmatpush1.xpose.msra.mxu0 0.0
        %298 = vmatprep.subr.mxu0 0.0
        %299 = vmatpush1.xpose.msra.mxu0 0.0
        %300 = vmatprep.subr.mxu0 0.0
        %301 = vmatpush1.xpose.msra.mxu0 0.0
        %302 = vmatprep.subr.mxu0 0.0
        %303 = vmatpush1.xpose.msra.mxu0 0.0
        %304 = vmatprep.subr.mxu0 0.0
        %305 = vmatpush1.xpose.msra.mxu0 0.0
        %306 = vmatprep.subr.mxu0 0.0
        %307 = vmatpush1.xpose.msra.mxu0 0.0
        %308 = vmatprep.subr.mxu0 0.0
        %309 = vmatpush1.xpose.msra.mxu0 0.0
        %310 = vmatprep.subr.mxu0 0.0
        %311 = vmatpush1.xpose.msra.mxu0 0.0
        %312 = vmatprep.subr.mxu0 0.0
        %313 = vmatpush1.xpose.msra.mxu0 0.0
        %314 = vmatprep.subr.mxu0 0.0
        %315 = vmatpush1.xpose.msra.mxu0 0.0
        %316 = vmatprep.subr.mxu0 0.0
        %317 = vmatpush1.xpose.msra.mxu0 0.0
        %318 = vmatprep.mubr.f32.mxu0 0.0
        %319 = vmatmul.mubr.f32.gmra.mrb[0].mxu0 %v162
        %v320 = vpop.f32.mrb[0].mxu0
        %v321 = vadd.f32 %v246, %v320
        %v322 = vpop.f32.mrb[0].mxu0
        %323 = vmatprep.mubr.f32.mxu0 0.0
        %324 = vmatmul.mubr.f32.gmra.mrb[0].mxu0 %v165
        %v325 = vpop.f32.mrb[0].mxu0
        %v326 = vadd.f32 %v251, %v325
        %v327 = vpop.f32.mrb[0].mxu0
        %328 = vdwg.mxu0
        %v329 = vlog2.pop %v321
        %v330 = vmul.f32 %v329, 0.6931472
        %v331 = vlog2.pop %v326
        %v332 = vmul.f32 %v331, 0.6931472
        %vm333 = vcmask 211968
        %v334 = vsel %vm333, %v330, 0.0
        %335 = vadd.xlane.f32.xlu0 %v334
        %v336 = vpop.xlane.xlu0 %335
        %v337 = vsel %vm333, %v332, 0.0
        %338 = vadd.xlane.f32.xlu0 %v337
        %v339 = vpop.xlane.xlu0 %338
        %v340 = vrcp.pop 26.0
        %v341 = vmul.f32 %v336, %v340
        %v342 = vmul.f32 %v339, %v340
        %v343 = vsub.f32 %v330, %v341
        %v344 = vsub.f32 %v332, %v342
        %345 = vst.msk [vmem:[%s136] sm:$0xff] %vm333, %v343
        %346 = vst.msk [vmem:[%s136 + $0x8] sm:$0xff] %vm333, %v344
        %s347 = sand.u32 %s71, 1
        %s348 = scalar_lea.sflag [#allocation3], %s347
        %s349 = sand.u32 %s71, 1
        %s350 = smul.addr %s349, 16
        %s351 = scalar_lea.vmem [#allocation2], %s350
        // Predicated region
        $region29: #{_logfbank_impl.1} parent=27 // pred_check
          %p352 = pneg %p81
        $region30: #{_logfbank_impl.1} parent=27 // pred_check_branch
          %354 = sbr.rel (%p352) target = $region32
        $region31: #{_logfbank_impl.1} parent=27 // pred_region
          %s356 = ssub.s32 256, 256
          %357 = vsyncadd %s348, %s356
          %s358 = smul.addr %s16, 2
          %s359 = smul.addr %s358, 128
          %s360 = scalar_lea.hbm %s2, %s359
          %s361 = sshll.u32 %s351, 4
          %s362 = int_to_ptr.vmem [resolvable:$true] %s361
          %367 = dma.vmem_to_hbm [thread:$0]  %s362, 256, %s360, %s348, 128, 128, 8
        $region32: #{_logfbank_impl.1} parent=27 // pred_fallthru
          _
      $region28: #{_logfbank_impl.1} parent=5 // pred_fallthru
        _
      %p368 = scmp.le.s32.totalorder 2, %s11
      // Predicated region
      $region33: #{_logfbank_impl.1} parent=5 // pred_check
        %p369 = pneg %p368
      $region34: #{_logfbank_impl.1} parent=5 // pred_check_branch
        %371 = sbr.rel (%p369) target = $region36
      $region35: #{_logfbank_impl.1} parent=5 // pred_region
        %s372 = ssub.s32 %s11, 2
        // Predicated region
        $region37: #{_logfbank_impl.1} parent=35 // pred_check
          %p373 = pneg %p87
        $region38: #{_logfbank_impl.1} parent=35 // pred_check_branch
          %375 = sbr.rel (%p373) target = $region40
        $region39: #{_logfbank_impl.1} parent=35 // pred_region
          %s376 = sand.u32 %s72, 1
          %s377 = scalar_lea.sflag [#allocation3], %s376
          %s378 = sand.u32 %s72, 1
          %s379 = smul.addr %s378, 16
          %s380 = scalar_lea.vmem [#allocation2], %s379
          %381 = dma.done %s377, 256
        $region40: #{_logfbank_impl.1} parent=35 // pred_fallthru
          _
      $region36: #{_logfbank_impl.1} parent=5 // pred_fallthru
        _
    $region6: #{_logfbank_impl.1} parent=1 // loop_footer
      %s15 = sadd.s32 1, %s11
    $region7: #{_logfbank_impl.1} parent=1 // loop_footer_branch
      %10 = sbr.rel target = $region3
    $region8: #{_logfbank_impl.1} parent=1 // loop_exit
      _
    %382 = vsyncpa [#allocation3], 1
    %s383 = scalar_lea.sflag [#allocation3], 1
    %384 = vsyncpa %s383, 1

</llo_original>
